<compile_context>
chip_gen: v7x
topology: tpu7x:2x2x1
jax: 0.10.0
libtpu: 0.0.40
codegen_flags: <defaults>
</compile_context>

<pallas_src>
import functools

import jax
import jax.numpy as jnp
import numpy as np
from jax.experimental import pallas as pl
from jax.experimental.pallas import tpu as pltpu


def _round_up(x, m):
    return ((x + m - 1) // m) * m


# ----------------------------------------------------------------------------
# Fused Pallas kernel: whole FFnetwork layer stack in one body.
#   refs = x_0..x_{n_seg-1}, W0_0..W0_{n_seg-1}, b0, (W_l, b_l) for l>=1, out
# ----------------------------------------------------------------------------
def _ffnet_fused_kernel(*refs, n_seg, n_layers, apply_relu):
    xs = refs[:n_seg]
    w0s = refs[n_seg: 2 * n_seg]
    b0_ref = refs[2 * n_seg]
    rest = refs[2 * n_seg + 1: 2 * n_seg + 1 + 2 * (n_layers - 1)]
    o_ref = refs[-1]

    # Layer 0: split-K over the input segments (fused concat), f32 accumulation.
    h = jnp.dot(xs[0][...], w0s[0][...], preferred_element_type=jnp.float32)
    for i in range(1, n_seg):
        h = h + jnp.dot(xs[i][...], w0s[i][...], preferred_element_type=jnp.float32)
    h = h + b0_ref[...]                      # (1, N0) broadcasts over rows, f32
    if apply_relu[0]:
        h = jnp.maximum(h, 0.0)

    # Remaining layers, all resident in VMEM.
    for ll in range(1, n_layers):
        w_ref = rest[2 * (ll - 1)]
        b_ref = rest[2 * (ll - 1) + 1]
        h = jnp.dot(h.astype(w_ref.dtype), w_ref[...],
                    preferred_element_type=jnp.float32)
        h = h + b_ref[...]
        if apply_relu[ll]:
            h = jnp.maximum(h, 0.0)

    o_ref[...] = h.astype(o_ref.dtype)


# ----------------------------------------------------------------------------
# FFnetwork forward (ffnet_type='normal', layer_types all 'normal')
# ----------------------------------------------------------------------------
class FFnetworkPallas:
    """JAX/Pallas re-implementation of FFnetwork.forward for 'normal' ffnets."""

    def __init__(self, input_dims_list, num_filters_list, key,
                 *, weight_dtype=jnp.bfloat16):
        # determine_input_dims for 'normal': concat along the filter dim;
        # trailing dims must match.
        base_tail = list(input_dims_list[0][1:])
        for d in input_dims_list[1:]:
            assert list(d[1:]) == base_tail, "FFnet: invalid concatenation"
        num_cat_filters = sum(d[0] for d in input_dims_list)
        self.input_dims = [num_cat_filters] + base_tail

        # Per-input flattened feature widths (the K-slices of W0).
        self.seg_widths = [int(np.prod(d)) for d in input_dims_list]
        d_in = int(np.prod(self.input_dims))
        assert d_in == sum(self.seg_widths)

        self.weight_dtype = weight_dtype
        self.layer_widths = [int(n) for n in num_filters_list]
        # Pad every layer width to a multiple of 128 lanes (lane-dense stores,
        # full MXU columns). Zero padding keeps the math identical.
        self.padded_widths = [_round_up(n, 128) for n in self.layer_widths]
        n_layers = len(self.layer_widths)
        # NDNlayer hidden layers use ReLU; final layer is linear.
        self.apply_relu = tuple([True] * (n_layers - 1) + [False])

        # ---- layer 0: weights pre-split along K to match the input segments.
        key, kw, kb = jax.random.split(key, 3)
        w0 = jax.random.normal(kw, (d_in, self.layer_widths[0]), jnp.float32)
        w0 = w0 / jnp.sqrt(jnp.float32(d_in))
        b0 = 0.01 * jax.random.normal(kb, (self.layer_widths[0],), jnp.float32)
        n0p = self.padded_widths[0]
        w0p = jnp.zeros((d_in, n0p), weight_dtype)
        w0p = w0p.at[:, : self.layer_widths[0]].set(w0.astype(weight_dtype))
        offs = np.cumsum([0] + self.seg_widths)
        self.w0_segments = [w0p[offs[i]: offs[i + 1]]
                            for i in range(len(self.seg_widths))]
        self.b0 = jnp.zeros((1, n0p), jnp.float32)
        self.b0 = self.b0.at[:, : self.layer_widths[0]].set(b0[None, :])

        # ---- subsequent layers (zero-padded to the padded widths).
        self.rest_params = []
        for ll in range(1, n_layers):
            key, kw, kb = jax.random.split(key, 3)
            k_in, n_out = self.layer_widths[ll - 1], self.layer_widths[ll]
            w = jax.random.normal(kw, (k_in, n_out), jnp.float32)
            w = w / jnp.sqrt(jnp.float32(k_in))
            b = 0.01 * jax.random.normal(kb, (n_out,), jnp.float32)
            kp, npad = self.padded_widths[ll - 1], self.padded_widths[ll]
            wp = jnp.zeros((kp, npad), weight_dtype)
            wp = wp.at[:k_in, :n_out].set(w.astype(weight_dtype))
            bp = jnp.zeros((1, npad), jnp.float32)
            bp = bp.at[:, :n_out].set(b[None, :])
            self.rest_params.append((wp, bp))

    def __call__(self, inputs):
        if not isinstance(inputs, (list, tuple)):
            inputs = [inputs]
        assert len(inputs) == len(self.seg_widths)
        xs = [x.astype(self.weight_dtype) for x in inputs]
        m = xs[0].shape[0]

        # M tiling: one block for small batches; 256-row tiles (marked
        # "parallel" -> shards across v7x's two TensorCores) for big batches.
        m8 = _round_up(m, 8)
        tm = 256 if m8 >= 256 else m8
        m_pad = _round_up(m8, tm)
        if m_pad != m:
            xs = [jnp.pad(x, ((0, m_pad - m), (0, 0))) for x in xs]

        n_seg = len(xs)
        n_layers = len(self.layer_widths)
        n_out_p = self.padded_widths[-1]

        kernel = functools.partial(
            _ffnet_fused_kernel,
            n_seg=n_seg, n_layers=n_layers, apply_relu=self.apply_relu)

        in_specs = (
            [pl.BlockSpec((tm, kw), lambda i: (i, 0)) for kw in self.seg_widths]
            + [pl.BlockSpec((kw, self.padded_widths[0]), lambda i: (0, 0))
               for kw in self.seg_widths]
            + [pl.BlockSpec((1, self.padded_widths[0]), lambda i: (0, 0))]
        )
        args = list(xs) + list(self.w0_segments) + [self.b0]
        for ll in range(1, n_layers):
            w, b = self.rest_params[ll - 1]
            in_specs.append(pl.BlockSpec(
                (self.padded_widths[ll - 1], self.padded_widths[ll]),
                lambda i: (0, 0)))
            in_specs.append(pl.BlockSpec(
                (1, self.padded_widths[ll]), lambda i: (0, 0)))
            args += [w, b]

        # Advisory cost estimate so XLA schedules around this small call.
        flops = 2 * m_pad * sum(self.seg_widths) * self.padded_widths[0]
        for ll in range(1, n_layers):
            flops += 2 * m_pad * self.padded_widths[ll - 1] * self.padded_widths[ll]
        bytes_accessed = sum(int(np.prod(a.shape)) * a.dtype.itemsize for a in args)
        bytes_accessed += m_pad * n_out_p * 4

        out = pl.pallas_call(
            kernel,
            out_shape=jax.ShapeDtypeStruct((m_pad, n_out_p), jnp.float32),
            grid_spec=pltpu.PrefetchScalarGridSpec(
                num_scalar_prefetch=0,
                grid=(m_pad // tm,),
                in_specs=in_specs,
                out_specs=pl.BlockSpec((tm, n_out_p), lambda i: (i, 0)),
            ),
            compiler_params=pltpu.CompilerParams(
                dimension_semantics=("parallel",),
            ),
            cost_estimate=pl.CostEstimate(
                flops=flops, transcendentals=0, bytes_accessed=bytes_accessed),
        )(*args)

        # Strip M / lane padding.
        return out[:m, : self.layer_widths[-1]]


# ----------------------------------------------------------------------------
# Reference in plain JAX (same precision path) for correctness check.
# ----------------------------------------------------------------------------
def reference_forward(net, inputs):
    if not isinstance(inputs, (list, tuple)):
        inputs = [inputs]
    xs = [x.astype(net.weight_dtype) for x in inputs]
    h = jnp.dot(xs[0], net.w0_segments[0], preferred_element_type=jnp.float32)
    for i in range(1, len(xs)):
        h = h + jnp.dot(xs[i], net.w0_segments[i],
                        preferred_element_type=jnp.float32)
    h = h + net.b0
    if net.apply_relu[0]:
        h = jnp.maximum(h, 0.0)
    for ll, (w, b) in enumerate(net.rest_params, start=1):
        h = jnp.dot(h.astype(w.dtype), w, preferred_element_type=jnp.float32) + b
        if net.apply_relu[ll]:
            h = jnp.maximum(h, 0.0)
    return h[:, : net.layer_widths[-1]]


if __name__ == "__main__":
    key = jax.random.PRNGKey(0)

    # Two upstream networks feeding this FFnetwork, each with input_dims
    # [C=2, W=16, H=16, T=1]  ->  concatenated input_dims [4, 16, 16, 1].
    batch = 8
    input_dims_list = [[2, 16, 16, 1], [2, 16, 16, 1]]
    num_filters_list = [128, 32]  # hidden NDNlayer (ReLU), then linear layer

    key, k0, k1, kp = jax.random.split(key, 4)
    # Inputs arrive flattened NCHW(T): [N, C*W*H*T]
    x0 = jax.random.normal(k0, (batch, int(np.prod(input_dims_list[0]))), jnp.float32)
    x1 = jax.random.normal(k1, (batch, int(np.prod(input_dims_list[1]))), jnp.float32)

    net = FFnetworkPallas(input_dims_list, num_filters_list, kp)

    out = jax.block_until_ready(net([x0, x1]))

    ref = reference_forward(net, [x0, x1])
    assert out.shape == (batch, num_filters_list[-1])
    np.testing.assert_allclose(np.asarray(out), np.asarray(ref), rtol=5e-3, atol=5e-3)

    print("KERNEL_OK")
</pallas_src>

<mosaic_0001>
module attributes {stable_mosaic.version = 11 : i64} {
  func.func @_ffnet_fused_kernel(%arg0: i32, %arg1: memref<8x512xbf16, #tpu.memory_space<vmem>>, %arg2: memref<8x512xbf16, #tpu.memory_space<vmem>>, %arg3: memref<512x128xbf16, #tpu.memory_space<vmem>>, %arg4: memref<512x128xbf16, #tpu.memory_space<vmem>>, %arg5: memref<1x128xf32, #tpu.memory_space<vmem>>, %arg6: memref<128x128xbf16, #tpu.memory_space<vmem>>, %arg7: memref<1x128xf32, #tpu.memory_space<vmem>>, %arg8: memref<8x128xf32, #tpu.memory_space<vmem>>) attributes {dimension_semantics = [#tpu.dimension_semantics<parallel>], iteration_bounds = array<i64: 1>, scalar_prefetch = 0 : i64, scratch_operands = 0 : i64, tpu.core_type = #tpu.core_type<tc>, window_params = [{transform_indices = @transform_0, window_bounds = array<i64: 8, 512>}, {transform_indices = @transform_1, window_bounds = array<i64: 8, 512>}, {pipeline_mode = #tpu.pipeline_mode<synchronous>, transform_indices = @transform_2, window_bounds = array<i64: 512, 128>}, {pipeline_mode = #tpu.pipeline_mode<synchronous>, transform_indices = @transform_3, window_bounds = array<i64: 512, 128>}, {pipeline_mode = #tpu.pipeline_mode<synchronous>, transform_indices = @transform_4, window_bounds = array<i64: 1, 128>}, {pipeline_mode = #tpu.pipeline_mode<synchronous>, transform_indices = @transform_5, window_bounds = array<i64: 128, 128>}, {pipeline_mode = #tpu.pipeline_mode<synchronous>, transform_indices = @transform_6, window_bounds = array<i64: 1, 128>}, {transform_indices = @transform_7, window_bounds = array<i64: 8, 128>}]} {
    %c0 = arith.constant 0 : index
    %c0_0 = arith.constant 0 : index
    %0 = vector.load %arg1[%c0, %c0_0] : memref<8x512xbf16, #tpu.memory_space<vmem>>, vector<8x512xbf16>
    %c0_1 = arith.constant 0 : index
    %c0_2 = arith.constant 0 : index
    %1 = vector.load %arg3[%c0_1, %c0_2] : memref<512x128xbf16, #tpu.memory_space<vmem>>, vector<512x128xbf16>
    %cst = arith.constant dense<0.000000e+00> : vector<8x128xf32>
    %2 = tpu.matmul %0, %1, %cst {dimension_numbers = #tpu.dot_dimension_numbers<[1], [0], [0], [1], [0, 0, 1, 1], [], []>} : vector<8x512xbf16>, vector<512x128xbf16>, vector<8x128xf32> -> vector<8x128xf32>
    %c0_3 = arith.constant 0 : index
    %c0_4 = arith.constant 0 : index
    %3 = vector.load %arg2[%c0_3, %c0_4] : memref<8x512xbf16, #tpu.memory_space<vmem>>, vector<8x512xbf16>
    %c0_5 = arith.constant 0 : index
    %c0_6 = arith.constant 0 : index
    %4 = vector.load %arg4[%c0_5, %c0_6] : memref<512x128xbf16, #tpu.memory_space<vmem>>, vector<512x128xbf16>
    %cst_7 = arith.constant dense<0.000000e+00> : vector<8x128xf32>
    %5 = tpu.matmul %3, %4, %cst_7 {dimension_numbers = #tpu.dot_dimension_numbers<[1], [0], [0], [1], [0, 0, 1, 1], [], []>} : vector<8x512xbf16>, vector<512x128xbf16>, vector<8x128xf32> -> vector<8x128xf32>
    %6 = arith.addf %2, %5 : vector<8x128xf32>
    %c0_8 = arith.constant 0 : index
    %c0_9 = arith.constant 0 : index
    %7 = vector.load %arg5[%c0_8, %c0_9] : memref<1x128xf32, #tpu.memory_space<vmem>>, vector<1x128xf32>
    %8 = vector.broadcast %7 : vector<1x128xf32> to vector<8x128xf32>
    %9 = arith.addf %6, %8 : vector<8x128xf32>
    %cst_10 = arith.constant 0.000000e+00 : f32
    %10 = vector.broadcast %cst_10 : f32 to vector<8x128xf32>
    %11 = arith.maximumf %9, %10 : vector<8x128xf32>
    %12 = arith.truncf %11 : vector<8x128xf32> to vector<8x128xbf16>
    %c0_11 = arith.constant 0 : index
    %c0_12 = arith.constant 0 : index
    %13 = vector.load %arg6[%c0_11, %c0_12] : memref<128x128xbf16, #tpu.memory_space<vmem>>, vector<128x128xbf16>
    %cst_13 = arith.constant dense<0.000000e+00> : vector<8x128xf32>
    %14 = tpu.matmul %12, %13, %cst_13 {dimension_numbers = #tpu.dot_dimension_numbers<[1], [0], [0], [1], [0, 0, 1, 1], [], []>} : vector<8x128xbf16>, vector<128x128xbf16>, vector<8x128xf32> -> vector<8x128xf32>
    %c0_14 = arith.constant 0 : index
    %c0_15 = arith.constant 0 : index
    %15 = vector.load %arg7[%c0_14, %c0_15] : memref<1x128xf32, #tpu.memory_space<vmem>>, vector<1x128xf32>
    %16 = vector.broadcast %15 : vector<1x128xf32> to vector<8x128xf32>
    %17 = arith.addf %14, %16 : vector<8x128xf32>
    %c0_16 = arith.constant 0 : index
    %c0_17 = arith.constant 0 : index
    %18 = vector.load %arg8[%c0_16, %c0_17] : memref<8x128xf32, #tpu.memory_space<vmem>>, vector<8x128xf32>
    tpu.vector_store %arg8[%c0_16, %c0_17], %17 {strides = array<i32>} : memref<8x128xf32, #tpu.memory_space<vmem>>, vector<8x128xf32>,
    return
  }
  func.func @transform_0(%arg0: i32) -> (i32, i32) {
    %c0_i32 = arith.constant 0 : i32
    %c0_i32_0 = arith.constant 0 : i32
    return %arg0, %c0_i32 : i32, i32
  }
  func.func @transform_1(%arg0: i32) -> (i32, i32) {
    %c0_i32 = arith.constant 0 : i32
    %c0_i32_0 = arith.constant 0 : i32
    return %arg0, %c0_i32 : i32, i32
  }
  func.func @transform_2(%arg0: i32) -> (i32, i32) {
    %c0_i32 = arith.constant 0 : i32
    %c0_i32_0 = arith.constant 0 : i32
    %c0_i32_1 = arith.constant 0 : i32
    return %c0_i32, %c0_i32_0 : i32, i32
  }
  func.func @transform_3(%arg0: i32) -> (i32, i32) {
    %c0_i32 = arith.constant 0 : i32
    %c0_i32_0 = arith.constant 0 : i32
    %c0_i32_1 = arith.constant 0 : i32
    return %c0_i32, %c0_i32_0 : i32, i32
  }
  func.func @transform_4(%arg0: i32) -> (i32, i32) {
    %c0_i32 = arith.constant 0 : i32
    %c0_i32_0 = arith.constant 0 : i32
    %c0_i32_1 = arith.constant 0 : i32
    return %c0_i32, %c0_i32_0 : i32, i32
  }
  func.func @transform_5(%arg0: i32) -> (i32, i32) {
    %c0_i32 = arith.constant 0 : i32
    %c0_i32_0 = arith.constant 0 : i32
    %c0_i32_1 = arith.constant 0 : i32
    return %c0_i32, %c0_i32_0 : i32, i32
  }
  func.func @transform_6(%arg0: i32) -> (i32, i32) {
    %c0_i32 = arith.constant 0 : i32
    %c0_i32_0 = arith.constant 0 : i32
    %c0_i32_1 = arith.constant 0 : i32
    return %c0_i32, %c0_i32_0 : i32, i32
  }
  func.func @transform_7(%arg0: i32) -> (i32, i32) {
    %c0_i32 = arith.constant 0 : i32
    %c0_i32_0 = arith.constant 0 : i32
    return %arg0, %c0_i32 : i32, i32
  }
}

</mosaic_0001>

<llo_original>
// kernel: tpu_custom_call.1
$region0: #{tpu_custom_call.1}
  #allocation0 [shape = 'u32[]', space=smem, size = 0x4, offset = 0x4, fixed_abs, tag = 'smem constant byte address 0x4 - core index']
  #allocation1 [shape = 'u32[144,128]{1,0:T(1,128)}', space=vmem, size = 0x12000, scoped, tag = 'internal scratch']
  %s0 = inlined_call_operand.hbm [shape: bf16[8,512], index: 0, kind: input, shape index: {}]
  %s1 = inlined_call_operand.hbm [shape: bf16[8,512], index: 1, kind: input, shape index: {}]
  %s2 = inlined_call_operand.hbm [shape: bf16[512,128], index: 2, kind: input, shape index: {}]
  %s3 = inlined_call_operand.hbm [shape: bf16[512,128], index: 3, kind: input, shape index: {}]
  %s4 = inlined_call_operand.vmem [shape: f32[1,128], index: 4, kind: input, shape index: {}]
  %s5 = inlined_call_operand.hbm [shape: bf16[128,128], index: 5, kind: input, shape index: {}]
  %s6 = inlined_call_operand.vmem [shape: f32[1,128], index: 6, kind: input, shape index: {}]
  %s7 = inlined_call_operand.hbm [shape: f32[8,128], index: 7, kind: output, shape index: {}]
  %s8 = sld [smem:[#allocation0]]
  $region58: #{tpu_custom_call.1} parent=0
    _
  %s10 = ssub.s32 1, %s8
  %s11 = scalar_select 0, %s10, %s8
  $region1: #{tpu_custom_call.1} parent=0
    #allocation2 [shape = 'u8[8192]{0}', space=vmem, size = 0x2000, scoped, tag = 'input window, operand 0, single buffered']
    #allocation3 [shape = 's32[1]{0}', space=sflag, size = 0x4, scoped, tag = 'scoped memory for tpu_custom_call.1']
    #allocation4 [shape = 's32[1]{0}', space=sflag, size = 0x4, scoped, tag = 'scoped memory for tpu_custom_call.1']
    #allocation5 [shape = 'u8[8192]{0}', space=vmem, size = 0x2000, scoped, tag = 'input window, operand 1, single buffered']
    #allocation6 [shape = 's32[1]{0}', space=sflag, size = 0x4, scoped, tag = 'scoped memory for tpu_custom_call.1']
    #allocation7 [shape = 'u8[131072]{0}', space=vmem, size = 0x20000, scoped, tag = 'input window, operand 2, single buffered']
    #allocation8 [shape = 'u8[131072]{0}', space=vmem, size = 0x20000, scoped, tag = 'input window, operand 3, single buffered']
    #allocation9 [shape = 's32[1]{0}', space=sflag, size = 0x4, scoped, tag = 'scoped memory for tpu_custom_call.1']
    #allocation10 [shape = 'u8[32768]{0}', space=vmem, size = 0x8000, scoped, tag = 'input window, operand 5, single buffered']
    #allocation11 [shape = 'u8[4096]{0}', space=vmem, size = 0x1000, scoped, tag = 'output window, operand 0, single buffered']
    %12 = vsyncpa [#allocation3], 0
    %13 = vsyncpa [#allocation6], 0
    %14 = vsyncpa [#allocation9], 0
    %15 = vsyncpa [#allocation4], 0
    // Predicated region
    $region2: #{tpu_custom_call.1} parent=1 // pred_check
      _
    $region3: #{tpu_custom_call.1} parent=1 // pred_check_branch
      %17 = sbr.rel (0) target = $region5
    $region4: #{tpu_custom_call.1} parent=1 // pred_region
      %s19 = ssub.s32 256, 256
      %20 = vsyncadd [#allocation3], %s19
      %s22 = sshll.u32 [#allocation2], 4
      %s23 = int_to_ptr.vmem [resolvable:$true] %s22
      %25 = dma.hbm_to_vmem [thread:$0]  %s0, 256, %s23, [#allocation3]
    $region5: #{tpu_custom_call.1} parent=1 // pred_fallthru
      _
    // Predicated region
    $region6: #{tpu_custom_call.1} parent=1 // pred_check
      _
    $region7: #{tpu_custom_call.1} parent=1 // pred_check_branch
      %27 = sbr.rel (0) target = $region9
    $region8: #{tpu_custom_call.1} parent=1 // pred_region
      %s29 = ssub.s32 256, 256
      %30 = vsyncadd [#allocation6], %s29
      %s32 = sshll.u32 [#allocation5], 4
      %s33 = int_to_ptr.vmem [resolvable:$true] %s32
      %35 = dma.hbm_to_vmem [thread:$0]  %s1, 256, %s33, [#allocation6]
    $region9: #{tpu_custom_call.1} parent=1 // pred_fallthru
      _
    // Predicated region
    $region10: #{tpu_custom_call.1} parent=1 // pred_check
      _
    $region11: #{tpu_custom_call.1} parent=1 // pred_check_branch
      %37 = sbr.rel (0) target = $region13
    $region12: #{tpu_custom_call.1} parent=1 // pred_region
      %s39 = ssub.s32 4096, 4096
      %40 = vsyncadd [#allocation6], %s39
      %s41 = sshll.u32 [#allocation7], 4
      %s42 = int_to_ptr.vmem [resolvable:$true] %s41
      %47 = dma.hbm_to_vmem [thread:$0]  %s2, 4096, %s42, [#allocation6], 64, 64, 4
    $region13: #{tpu_custom_call.1} parent=1 // pred_fallthru
      _
    // Predicated region
    $region14: #{tpu_custom_call.1} parent=1 // pred_check
      _
    $region15: #{tpu_custom_call.1} parent=1 // pred_check_branch
      %49 = sbr.rel (0) target = $region17
    $region16: #{tpu_custom_call.1} parent=1 // pred_region
      %s51 = ssub.s32 4096, 4096
      %52 = vsyncadd [#allocation9], %s51
      %s53 = sshll.u32 [#allocation8], 4
      %s54 = int_to_ptr.vmem [resolvable:$true] %s53
      %59 = dma.hbm_to_vmem [thread:$0]  %s3, 4096, %s54, [#allocation9], 64, 64, 4
    $region17: #{tpu_custom_call.1} parent=1 // pred_fallthru
      _
    // Predicated region
    $region18: #{tpu_custom_call.1} parent=1 // pred_check
      _
    $region19: #{tpu_custom_call.1} parent=1 // pred_check_branch
      %61 = sbr.rel (0) target = $region21
    $region20: #{tpu_custom_call.1} parent=1 // pred_region
      _
    $region21: #{tpu_custom_call.1} parent=1 // pred_fallthru
      _
    // Predicated region
    $region22: #{tpu_custom_call.1} parent=1 // pred_check
      _
    $region23: #{tpu_custom_call.1} parent=1 // pred_check_branch
      %63 = sbr.rel (0) target = $region25
    $region24: #{tpu_custom_call.1} parent=1 // pred_region
      %s65 = ssub.s32 1024, 1024
      %66 = vsyncadd [#allocation9], %s65
      %s67 = sshll.u32 [#allocation10], 4
      %s68 = int_to_ptr.vmem [resolvable:$true] %s67
      %73 = dma.hbm_to_vmem [thread:$0]  %s5, 1024, %s68, [#allocation9], 64, 64, 4
    $region25: #{tpu_custom_call.1} parent=1 // pred_fallthru
      _
    // Predicated region
    $region26: #{tpu_custom_call.1} parent=1 // pred_check
      _
    $region27: #{tpu_custom_call.1} parent=1 // pred_check_branch
      %75 = sbr.rel (0) target = $region29
    $region28: #{tpu_custom_call.1} parent=1 // pred_region
      _
    $region29: #{tpu_custom_call.1} parent=1 // pred_fallthru
      _
    // Predicated region
    $region30: #{tpu_custom_call.1} parent=1 // pred_check
      _
    $region31: #{tpu_custom_call.1} parent=1 // pred_check_branch
      %77 = sbr.rel (0) target = $region33
    $region32: #{tpu_custom_call.1} parent=1 // pred_region
      %78 = dma.done [#allocation3], 256
    $region33: #{tpu_custom_call.1} parent=1 // pred_fallthru
      _
    // Predicated region
    $region34: #{tpu_custom_call.1} parent=1 // pred_check
      _
    $region35: #{tpu_custom_call.1} parent=1 // pred_check_branch
      %80 = sbr.rel (0) target = $region37
    $region36: #{tpu_custom_call.1} parent=1 // pred_region
      %81 = dma.done [#allocation6], 256
    $region37: #{tpu_custom_call.1} parent=1 // pred_fallthru
      _
    // Predicated region
    $region38: #{tpu_custom_call.1} parent=1 // pred_check
      _
    $region39: #{tpu_custom_call.1} parent=1 // pred_check_branch
      %83 = sbr.rel (0) target = $region41
    $region40: #{tpu_custom_call.1} parent=1 // pred_region
      %84 = dma.done [#allocation6], 4096
    $region41: #{tpu_custom_call.1} parent=1 // pred_fallthru
      _
    // Predicated region
    $region42: #{tpu_custom_call.1} parent=1 // pred_check
      _
    $region43: #{tpu_custom_call.1} parent=1 // pred_check_branch
      %86 = sbr.rel (0) target = $region45
    $region44: #{tpu_custom_call.1} parent=1 // pred_region
      %87 = dma.done [#allocation9], 4096
    $region45: #{tpu_custom_call.1} parent=1 // pred_fallthru
      _
    // Predicated region
    $region46: #{tpu_custom_call.1} parent=1 // pred_check
      _
    $region47: #{tpu_custom_call.1} parent=1 // pred_check_branch
      %89 = sbr.rel (0) target = $region49
    $region48: #{tpu_custom_call.1} parent=1 // pred_region
      %90 = dma.done [#allocation9], 1024
    $region49: #{tpu_custom_call.1} parent=1 // pred_fallthru
      _
    %v92 = vld [vmem:[#allocation2] sm:$0xff]
    %v93 = vld [vmem:[#allocation2 + $0x8] sm:$0xff]
    %v94 = vld [vmem:[#allocation7] sm:$0xf]
    %v95 = vld [vmem:[#allocation7 + $0x4] sm:$0xf]
    %v96 = vld [vmem:[#allocation7 + $0x8] sm:$0xf]
    %v97 = vld [vmem:[#allocation7 + $0xc] sm:$0xf]
    %v98 = vld [vmem:[#allocation7 + $0x10] sm:$0xf]
    %v99 = vld [vmem:[#allocation7 + $0x14] sm:$0xf]
    %v100 = vld [vmem:[#allocation7 + $0x18] sm:$0xf]
    %v101 = vld [vmem:[#allocation7 + $0x1c] sm:$0xf]
    %v102 = vld [vmem:[#allocation7 + $0x20] sm:$0xf]
    %v103 = vld [vmem:[#allocation7 + $0x24] sm:$0xf]
    %v104 = vld [vmem:[#allocation7 + $0x28] sm:$0xf]
    %v105 = vld [vmem:[#allocation7 + $0x2c] sm:$0xf]
    %v106 = vld [vmem:[#allocation7 + $0x30] sm:$0xf]
    %v107 = vld [vmem:[#allocation7 + $0x34] sm:$0xf]
    %v108 = vld [vmem:[#allocation7 + $0x38] sm:$0xf]
    %v109 = vld [vmem:[#allocation7 + $0x3c] sm:$0xf]
    %v110 = vld [vmem:[#allocation7 + $0x40] sm:$0xf]
    %v111 = vld [vmem:[#allocation7 + $0x44] sm:$0xf]
    %v112 = vld [vmem:[#allocation7 + $0x48] sm:$0xf]
    %v113 = vld [vmem:[#allocation7 + $0x4c] sm:$0xf]
    %v114 = vld [vmem:[#allocation7 + $0x50] sm:$0xf]
    %v115 = vld [vmem:[#allocation7 + $0x54] sm:$0xf]
    %v116 = vld [vmem:[#allocation7 + $0x58] sm:$0xf]
    %v117 = vld [vmem:[#allocation7 + $0x5c] sm:$0xf]
    %v118 = vld [vmem:[#allocation7 + $0x60] sm:$0xf]
    %v119 = vld [vmem:[#allocation7 + $0x64] sm:$0xf]
    %v120 = vld [vmem:[#allocation7 + $0x68] sm:$0xf]
    %v121 = vld [vmem:[#allocation7 + $0x6c] sm:$0xf]
    %v122 = vld [vmem:[#allocation7 + $0x70] sm:$0xf]
    %v123 = vld [vmem:[#allocation7 + $0x74] sm:$0xf]
    %v124 = vld [vmem:[#allocation7 + $0x78] sm:$0xf]
    %v125 = vld [vmem:[#allocation7 + $0x7c] sm:$0xf]
    %v126 = vld [vmem:[#allocation7 + $0x80] sm:$0xf]
    %v127 = vld [vmem:[#allocation7 + $0x84] sm:$0xf]
    %v128 = vld [vmem:[#allocation7 + $0x88] sm:$0xf]
    %v129 = vld [vmem:[#allocation7 + $0x8c] sm:$0xf]
    %v130 = vld [vmem:[#allocation7 + $0x90] sm:$0xf]
    %v131 = vld [vmem:[#allocation7 + $0x94] sm:$0xf]
    %v132 = vld [vmem:[#allocation7 + $0x98] sm:$0xf]
    %v133 = vld [vmem:[#allocation7 + $0x9c] sm:$0xf]
    %v134 = vld [vmem:[#allocation7 + $0xa0] sm:$0xf]
    %v135 = vld [vmem:[#allocation7 + $0xa4] sm:$0xf]
    %v136 = vld [vmem:[#allocation7 + $0xa8] sm:$0xf]
    %v137 = vld [vmem:[#allocation7 + $0xac] sm:$0xf]
    %v138 = vld [vmem:[#allocation7 + $0xb0] sm:$0xf]
    %v139 = vld [vmem:[#allocation7 + $0xb4] sm:$0xf]
    %v140 = vld [vmem:[#allocation7 + $0xb8] sm:$0xf]
    %v141 = vld [vmem:[#allocation7 + $0xbc] sm:$0xf]
    %v142 = vld [vmem:[#allocation7 + $0xc0] sm:$0xf]
    %v143 = vld [vmem:[#allocation7 + $0xc4] sm:$0xf]
    %v144 = vld [vmem:[#allocation7 + $0xc8] sm:$0xf]
    %v145 = vld [vmem:[#allocation7 + $0xcc] sm:$0xf]
    %v146 = vld [vmem:[#allocation7 + $0xd0] sm:$0xf]
    %v147 = vld [vmem:[#allocation7 + $0xd4] sm:$0xf]
    %v148 = vld [vmem:[#allocation7 + $0xd8] sm:$0xf]
    %v149 = vld [vmem:[#allocation7 + $0xdc] sm:$0xf]
    %v150 = vld [vmem:[#allocation7 + $0xe0] sm:$0xf]
    %v151 = vld [vmem:[#allocation7 + $0xe4] sm:$0xf]
    %v152 = vld [vmem:[#allocation7 + $0xe8] sm:$0xf]
    %v153 = vld [vmem:[#allocation7 + $0xec] sm:$0xf]
    %v154 = vld [vmem:[#allocation7 + $0xf0] sm:$0xf]
    %v155 = vld [vmem:[#allocation7 + $0xf4] sm:$0xf]
    %v156 = vld [vmem:[#allocation7 + $0xf8] sm:$0xf]
    %v157 = vld [vmem:[#allocation7 + $0xfc] sm:$0xf]
    %v158 = vld [vmem:[#allocation5] sm:$0xff]
    %v159 = vld [vmem:[#allocation5 + $0x8] sm:$0xff]
    %v160 = vld [vmem:[#allocation8] sm:$0xf]
    %v161 = vld [vmem:[#allocation8 + $0x4] sm:$0xf]
    %v162 = vld [vmem:[#allocation8 + $0x8] sm:$0xf]
    %v163 = vld [vmem:[#allocation8 + $0xc] sm:$0xf]
    %v164 = vld [vmem:[#allocation8 + $0x10] sm:$0xf]
    %v165 = vld [vmem:[#allocation8 + $0x14] sm:$0xf]
    %v166 = vld [vmem:[#allocation8 + $0x18] sm:$0xf]
    %v167 = vld [vmem:[#allocation8 + $0x1c] sm:$0xf]
    %v168 = vld [vmem:[#allocation8 + $0x20] sm:$0xf]
    %v169 = vld [vmem:[#allocation8 + $0x24] sm:$0xf]
    %v170 = vld [vmem:[#allocation8 + $0x28] sm:$0xf]
    %v171 = vld [vmem:[#allocation8 + $0x2c] sm:$0xf]
    %v172 = vld [vmem:[#allocation8 + $0x30] sm:$0xf]
    %v173 = vld [vmem:[#allocation8 + $0x34] sm:$0xf]
    %v174 = vld [vmem:[#allocation8 + $0x38] sm:$0xf]
    %v175 = vld [vmem:[#allocation8 + $0x3c] sm:$0xf]
    %v176 = vld [vmem:[#allocation8 + $0x40] sm:$0xf]
    %v177 = vld [vmem:[#allocation8 + $0x44] sm:$0xf]
    %v178 = vld [vmem:[#allocation8 + $0x48] sm:$0xf]
    %v179 = vld [vmem:[#allocation8 + $0x4c] sm:$0xf]
    %v180 = vld [vmem:[#allocation8 + $0x50] sm:$0xf]
    %v181 = vld [vmem:[#allocation8 + $0x54] sm:$0xf]
    %v182 = vld [vmem:[#allocation8 + $0x58] sm:$0xf]
    %v183 = vld [vmem:[#allocation8 + $0x5c] sm:$0xf]
    %v184 = vld [vmem:[#allocation8 + $0x60] sm:$0xf]
    %v185 = vld [vmem:[#allocation8 + $0x64] sm:$0xf]
    %v186 = vld [vmem:[#allocation8 + $0x68] sm:$0xf]
    %v187 = vld [vmem:[#allocation8 + $0x6c] sm:$0xf]
    %v188 = vld [vmem:[#allocation8 + $0x70] sm:$0xf]
    %v189 = vld [vmem:[#allocation8 + $0x74] sm:$0xf]
    %v190 = vld [vmem:[#allocation8 + $0x78] sm:$0xf]
    %v191 = vld [vmem:[#allocation8 + $0x7c] sm:$0xf]
    %v192 = vld [vmem:[#allocation8 + $0x80] sm:$0xf]
    %v193 = vld [vmem:[#allocation8 + $0x84] sm:$0xf]
    %v194 = vld [vmem:[#allocation8 + $0x88] sm:$0xf]
    %v195 = vld [vmem:[#allocation8 + $0x8c] sm:$0xf]
    %v196 = vld [vmem:[#allocation8 + $0x90] sm:$0xf]
    %v197 = vld [vmem:[#allocation8 + $0x94] sm:$0xf]
    %v198 = vld [vmem:[#allocation8 + $0x98] sm:$0xf]
    %v199 = vld [vmem:[#allocation8 + $0x9c] sm:$0xf]
    %v200 = vld [vmem:[#allocation8 + $0xa0] sm:$0xf]
    %v201 = vld [vmem:[#allocation8 + $0xa4] sm:$0xf]
    %v202 = vld [vmem:[#allocation8 + $0xa8] sm:$0xf]
    %v203 = vld [vmem:[#allocation8 + $0xac] sm:$0xf]
    %v204 = vld [vmem:[#allocation8 + $0xb0] sm:$0xf]
    %v205 = vld [vmem:[#allocation8 + $0xb4] sm:$0xf]
    %v206 = vld [vmem:[#allocation8 + $0xb8] sm:$0xf]
    %v207 = vld [vmem:[#allocation8 + $0xbc] sm:$0xf]
    %v208 = vld [vmem:[#allocation8 + $0xc0] sm:$0xf]
    %v209 = vld [vmem:[#allocation8 + $0xc4] sm:$0xf]
    %v210 = vld [vmem:[#allocation8 + $0xc8] sm:$0xf]
    %v211 = vld [vmem:[#allocation8 + $0xcc] sm:$0xf]
    %v212 = vld [vmem:[#allocation8 + $0xd0] sm:$0xf]
    %v213 = vld [vmem:[#allocation8 + $0xd4] sm:$0xf]
    %v214 = vld [vmem:[#allocation8 + $0xd8] sm:$0xf]
    %v215 = vld [vmem:[#allocation8 + $0xdc] sm:$0xf]
    %v216 = vld [vmem:[#allocation8 + $0xe0] sm:$0xf]
    %v217 = vld [vmem:[#allocation8 + $0xe4] sm:$0xf]
    %v218 = vld [vmem:[#allocation8 + $0xe8] sm:$0xf]
    %v219 = vld [vmem:[#allocation8 + $0xec] sm:$0xf]
    %v220 = vld [vmem:[#allocation8 + $0xf0] sm:$0xf]
    %v221 = vld [vmem:[#allocation8 + $0xf4] sm:$0xf]
    %v222 = vld [vmem:[#allocation8 + $0xf8] sm:$0xf]
    %v223 = vld [vmem:[#allocation8 + $0xfc] sm:$0xf]
    %v226 = vunpack.c.l.b16 %v158
    %v227 = vunpack.c.h.b16 %v158
    %v228 = vunpack.c.l.b16 %v159
    %v229 = vunpack.c.h.b16 %v159
    %v230 = vpack.c.b16 %v226, %v226
    %v231 = vpack.c.b16 %v227, %v227
    %v232 = vpack.c.b16 %v228, %v228
    %v233 = vpack.c.b16 %v229, %v229
    %v302 = vunpack.c.l.b16 %v160
    %v303 = vunpack.c.l.b16 %v161
    %v304 = vunpack.c.l.b16 %v162
    %v305 = vunpack.c.l.b16 %v163
    %v306 = vunpack.c.l.b16 %v164
    %v307 = vunpack.c.l.b16 %v165
    %v308 = vunpack.c.l.b16 %v166
    %v309 = vunpack.c.l.b16 %v167
    %v310 = vunpack.c.l.b16 %v168
    %v311 = vunpack.c.l.b16 %v169
    %v312 = vunpack.c.l.b16 %v170
    %v313 = vunpack.c.l.b16 %v171
    %v314 = vunpack.c.l.b16 %v172
    %v315 = vunpack.c.l.b16 %v173
    %v316 = vunpack.c.l.b16 %v174
    %v317 = vunpack.c.l.b16 %v175
    %v318 = vunpack.c.l.b16 %v176
    %v319 = vunpack.c.l.b16 %v177
    %v320 = vunpack.c.l.b16 %v178
    %v321 = vunpack.c.l.b16 %v179
    %v322 = vunpack.c.l.b16 %v180
    %v323 = vunpack.c.l.b16 %v181
    %v324 = vunpack.c.l.b16 %v182
    %v325 = vunpack.c.l.b16 %v183
    %v326 = vunpack.c.l.b16 %v184
    %v327 = vunpack.c.l.b16 %v185
    %v328 = vunpack.c.l.b16 %v186
    %v329 = vunpack.c.l.b16 %v187
    %v330 = vunpack.c.l.b16 %v188
    %v331 = vunpack.c.l.b16 %v189
    %v332 = vunpack.c.l.b16 %v190
    %v333 = vunpack.c.l.b16 %v191
    %v334 = vunpack.c.l.b16 %v192
    %v335 = vunpack.c.l.b16 %v193
    %v336 = vunpack.c.l.b16 %v194
    %v337 = vunpack.c.l.b16 %v195
    %v338 = vunpack.c.l.b16 %v196
    %v339 = vunpack.c.l.b16 %v197
    %v340 = vunpack.c.l.b16 %v198
    %v341 = vunpack.c.l.b16 %v199
    %v342 = vunpack.c.l.b16 %v200
    %v343 = vunpack.c.l.b16 %v201
    %v344 = vunpack.c.l.b16 %v202
    %v345 = vunpack.c.l.b16 %v203
    %v346 = vunpack.c.l.b16 %v204
    %v347 = vunpack.c.l.b16 %v205
    %v348 = vunpack.c.l.b16 %v206
    %v349 = vunpack.c.l.b16 %v207
    %v350 = vunpack.c.l.b16 %v208
    %v351 = vunpack.c.l.b16 %v209
    %v352 = vunpack.c.l.b16 %v210
    %v353 = vunpack.c.l.b16 %v211
    %v354 = vunpack.c.l.b16 %v212
    %v355 = vunpack.c.l.b16 %v213
    %v356 = vunpack.c.l.b16 %v214
    %v357 = vunpack.c.l.b16 %v215
    %v358 = vunpack.c.l.b16 %v216
    %v359 = vunpack.c.l.b16 %v217
    %v360 = vunpack.c.l.b16 %v218
    %v361 = vunpack.c.l.b16 %v219
    %v362 = vunpack.c.l.b16 %v220
    %v363 = vunpack.c.l.b16 %v221
    %v364 = vunpack.c.l.b16 %v222
    %v365 = vunpack.c.l.b16 %v223
    %v366 = vpack.c.b16 %v303, %v302
    %v367 = vpack.c.b16 %v305, %v304
    %v368 = vpack.c.b16 %v307, %v306
    %v369 = vpack.c.b16 %v309, %v308
    %v370 = vpack.c.b16 %v311, %v310
    %v371 = vpack.c.b16 %v313, %v312
    %v372 = vpack.c.b16 %v315, %v314
    %v373 = vpack.c.b16 %v317, %v316
    %v374 = vpack.c.b16 %v319, %v318
    %v375 = vpack.c.b16 %v321, %v320
    %v376 = vpack.c.b16 %v323, %v322
    %v377 = vpack.c.b16 %v325, %v324
    %v378 = vpack.c.b16 %v327, %v326
    %v379 = vpack.c.b16 %v329, %v328
    %v380 = vpack.c.b16 %v331, %v330
    %v381 = vpack.c.b16 %v333, %v332
    %v382 = vpack.c.b16 %v335, %v334
    %v383 = vpack.c.b16 %v337, %v336
    %v384 = vpack.c.b16 %v339, %v338
    %v385 = vpack.c.b16 %v341, %v340
    %v386 = vpack.c.b16 %v343, %v342
    %v387 = vpack.c.b16 %v345, %v344
    %v388 = vpack.c.b16 %v347, %v346
    %v389 = vpack.c.b16 %v349, %v348
    %v390 = vpack.c.b16 %v351, %v350
    %v391 = vpack.c.b16 %v353, %v352
    %v392 = vpack.c.b16 %v355, %v354
    %v393 = vpack.c.b16 %v357, %v356
    %v394 = vpack.c.b16 %v359, %v358
    %v395 = vpack.c.b16 %v361, %v360
    %v396 = vpack.c.b16 %v363, %v362
    %v397 = vpack.c.b16 %v365, %v364
    %430 = vmatprep.subr.bf16.mxu0 0
    %431 = vmatpush1.bf16.msra.mxu0 %v366
    %432 = vmatprep.subr.bf16.mxu0 0
    %433 = vmatpush1.bf16.msra.mxu0 %v367
    %434 = vmatprep.subr.bf16.mxu0 0
    %435 = vmatpush1.bf16.msra.mxu0 %v368
    %436 = vmatprep.subr.bf16.mxu0 0
    %437 = vmatpush1.bf16.msra.mxu0 %v369
    %438 = vmatprep.subr.bf16.mxu0 0
    %439 = vmatpush1.bf16.msra.mxu0 %v370
    %440 = vmatprep.subr.bf16.mxu0 0
    %441 = vmatpush1.bf16.msra.mxu0 %v371
    %442 = vmatprep.subr.bf16.mxu0 0
    %443 = vmatpush1.bf16.msra.mxu0 %v372
    %444 = vmatprep.subr.bf16.mxu0 0
    %445 = vmatpush1.bf16.msra.mxu0 %v373
    %446 = vmatprep.subr.bf16.mxu0 0
    %447 = vmatpush1.bf16.msra.mxu0 %v374
    %448 = vmatprep.subr.bf16.mxu0 0
    %449 = vmatpush1.bf16.msra.mxu0 %v375
    %450 = vmatprep.subr.bf16.mxu0 0
    %451 = vmatpush1.bf16.msra.mxu0 %v376
    %452 = vmatprep.subr.bf16.mxu0 0
    %453 = vmatpush1.bf16.msra.mxu0 %v377
    %454 = vmatprep.subr.bf16.mxu0 0
    %455 = vmatpush1.bf16.msra.mxu0 %v378
    %456 = vmatprep.subr.bf16.mxu0 0
    %457 = vmatpush1.bf16.msra.mxu0 %v379
    %458 = vmatprep.subr.bf16.mxu0 0
    %459 = vmatpush1.bf16.msra.mxu0 %v380
    %460 = vmatprep.subr.bf16.mxu0 0
    %461 = vmatpush1.bf16.msra.mxu0 %v381
    %462 = vmatprep.mubr.bf16.mxu0 %v231
    %463 = vmatmul.mubr.bf16.gmra.mrb[0].mxu0 %v230
    %v464 = vpop.f32.mrb[0].mxu0
    %v465 = vadd.f32 0.0, %v464
    %v466 = vpop.f32.mrb[0].mxu0
    %v467 = vpop.f32.mrb[0].mxu0
    %v468 = vpop.f32.mrb[0].mxu0
    %469 = vdwg.mxu0
    %470 = vmatprep.subr.bf16.mxu0 0
    %471 = vmatpush1.bf16.msra.mxu0 %v382
    %472 = vmatprep.subr.bf16.mxu0 0
    %473 = vmatpush1.bf16.msra.mxu0 %v383
    %474 = vmatprep.subr.bf16.mxu0 0
    %475 = vmatpush1.bf16.msra.mxu0 %v384
    %476 = vmatprep.subr.bf16.mxu0 0
    %477 = vmatpush1.bf16.msra.mxu0 %v385
    %478 = vmatprep.subr.bf16.mxu0 0
    %479 = vmatpush1.bf16.msra.mxu0 %v386
    %480 = vmatprep.subr.bf16.mxu0 0
    %481 = vmatpush1.bf16.msra.mxu0 %v387
    %482 = vmatprep.subr.bf16.mxu0 0
    %483 = vmatpush1.bf16.msra.mxu0 %v388
    %484 = vmatprep.subr.bf16.mxu0 0
    %485 = vmatpush1.bf16.msra.mxu0 %v389
    %486 = vmatprep.subr.bf16.mxu0 0
    %487 = vmatpush1.bf16.msra.mxu0 %v390
    %488 = vmatprep.subr.bf16.mxu0 0
    %489 = vmatpush1.bf16.msra.mxu0 %v391
    %490 = vmatprep.subr.bf16.mxu0 0
    %491 = vmatpush1.bf16.msra.mxu0 %v392
    %492 = vmatprep.subr.bf16.mxu0 0
    %493 = vmatpush1.bf16.msra.mxu0 %v393
    %494 = vmatprep.subr.bf16.mxu0 0
    %495 = vmatpush1.bf16.msra.mxu0 %v394
    %496 = vmatprep.subr.bf16.mxu0 0
    %497 = vmatpush1.bf16.msra.mxu0 %v395
    %498 = vmatprep.subr.bf16.mxu0 0
    %499 = vmatpush1.bf16.msra.mxu0 %v396
    %500 = vmatprep.subr.bf16.mxu0 0
    %501 = vmatpush1.bf16.msra.mxu0 %v397
    %502 = vmatprep.mubr.bf16.mxu0 %v233
    %503 = vmatmul.mubr.bf16.gmra.mrb[0].mxu0 %v232
    %v504 = vpop.f32.mrb[0].mxu0
    %v505 = vadd.f32 %v465, %v504
    %v506 = vpop.f32.mrb[0].mxu0
    %v507 = vpop.f32.mrb[0].mxu0
    %v508 = vpop.f32.mrb[0].mxu0
    %509 = vdwg.mxu0
    %v512 = vunpack.c.l.b16 %v92
    %v513 = vunpack.c.h.b16 %v92
    %v514 = vunpack.c.l.b16 %v93
    %v515 = vunpack.c.h.b16 %v93
    %v516 = vpack.c.b16 %v512, %v512
    %v517 = vpack.c.b16 %v513, %v513
    %v518 = vpack.c.b16 %v514, %v514
    %v519 = vpack.c.b16 %v515, %v515
    %v588 = vunpack.c.l.b16 %v94
    %v589 = vunpack.c.l.b16 %v95
    %v590 = vunpack.c.l.b16 %v96
    %v591 = vunpack.c.l.b16 %v97
    %v592 = vunpack.c.l.b16 %v98
    %v593 = vunpack.c.l.b16 %v99
    %v594 = vunpack.c.l.b16 %v100
    %v595 = vunpack.c.l.b16 %v101
    %v596 = vunpack.c.l.b16 %v102
    %v597 = vunpack.c.l.b16 %v103
    %v598 = vunpack.c.l.b16 %v104
    %v599 = vunpack.c.l.b16 %v105
    %v600 = vunpack.c.l.b16 %v106
    %v601 = vunpack.c.l.b16 %v107
    %v602 = vunpack.c.l.b16 %v108
    %v603 = vunpack.c.l.b16 %v109
    %v604 = vunpack.c.l.b16 %v110
    %v605 = vunpack.c.l.b16 %v111
    %v606 = vunpack.c.l.b16 %v112
    %v607 = vunpack.c.l.b16 %v113
    %v608 = vunpack.c.l.b16 %v114
    %v609 = vunpack.c.l.b16 %v115
    %v610 = vunpack.c.l.b16 %v116
    %v611 = vunpack.c.l.b16 %v117
    %v612 = vunpack.c.l.b16 %v118
    %v613 = vunpack.c.l.b16 %v119
    %v614 = vunpack.c.l.b16 %v120
    %v615 = vunpack.c.l.b16 %v121
    %v616 = vunpack.c.l.b16 %v122
    %v617 = vunpack.c.l.b16 %v123
    %v618 = vunpack.c.l.b16 %v124
    %v619 = vunpack.c.l.b16 %v125
    %v620 = vunpack.c.l.b16 %v126
    %v621 = vunpack.c.l.b16 %v127
    %v622 = vunpack.c.l.b16 %v128
    %v623 = vunpack.c.l.b16 %v129
    %v624 = vunpack.c.l.b16 %v130
    %v625 = vunpack.c.l.b16 %v131
    %v626 = vunpack.c.l.b16 %v132
    %v627 = vunpack.c.l.b16 %v133
    %v628 = vunpack.c.l.b16 %v134
    %v629 = vunpack.c.l.b16 %v135
    %v630 = vunpack.c.l.b16 %v136
    %v631 = vunpack.c.l.b16 %v137
    %v632 = vunpack.c.l.b16 %v138
    %v633 = vunpack.c.l.b16 %v139
    %v634 = vunpack.c.l.b16 %v140
    %v635 = vunpack.c.l.b16 %v141
    %v636 = vunpack.c.l.b16 %v142
    %v637 = vunpack.c.l.b16 %v143
    %v638 = vunpack.c.l.b16 %v144
    %v639 = vunpack.c.l.b16 %v145
    %v640 = vunpack.c.l.b16 %v146
    %v641 = vunpack.c.l.b16 %v147
    %v642 = vunpack.c.l.b16 %v148
    %v643 = vunpack.c.l.b16 %v149
    %v644 = vunpack.c.l.b16 %v150
    %v645 = vunpack.c.l.b16 %v151
    %v646 = vunpack.c.l.b16 %v152
    %v647 = vunpack.c.l.b16 %v153
    %v648 = vunpack.c.l.b16 %v154
    %v649 = vunpack.c.l.b16 %v155
    %v650 = vunpack.c.l.b16 %v156
    %v651 = vunpack.c.l.b16 %v157
    %v652 = vpack.c.b16 %v589, %v588
    %v653 = vpack.c.b16 %v591, %v590
    %v654 = vpack.c.b16 %v593, %v592
    %v655 = vpack.c.b16 %v595, %v594
    %v656 = vpack.c.b16 %v597, %v596
    %v657 = vpack.c.b16 %v599, %v598
    %v658 = vpack.c.b16 %v601, %v600
    %v659 = vpack.c.b16 %v603, %v602
    %v660 = vpack.c.b16 %v605, %v604
    %v661 = vpack.c.b16 %v607, %v606
    %v662 = vpack.c.b16 %v609, %v608
    %v663 = vpack.c.b16 %v611, %v610
    %v664 = vpack.c.b16 %v613, %v612
    %v665 = vpack.c.b16 %v615, %v614
    %v666 = vpack.c.b16 %v617, %v616
    %v667 = vpack.c.b16 %v619, %v618
    %v668 = vpack.c.b16 %v621, %v620
    %v669 = vpack.c.b16 %v623, %v622
    %v670 = vpack.c.b16 %v625, %v624
    %v671 = vpack.c.b16 %v627, %v626
    %v672 = vpack.c.b16 %v629, %v628
    %v673 = vpack.c.b16 %v631, %v630
    %v674 = vpack.c.b16 %v633, %v632
    %v675 = vpack.c.b16 %v635, %v634
    %v676 = vpack.c.b16 %v637, %v636
    %v677 = vpack.c.b16 %v639, %v638
    %v678 = vpack.c.b16 %v641, %v640
    %v679 = vpack.c.b16 %v643, %v642
    %v680 = vpack.c.b16 %v645, %v644
    %v681 = vpack.c.b16 %v647, %v646
    %v682 = vpack.c.b16 %v649, %v648
    %v683 = vpack.c.b16 %v651, %v650
    %716 = vmatprep.subr.bf16.mxu0 0
    %717 = vmatpush1.bf16.msra.mxu0 %v652
    %718 = vmatprep.subr.bf16.mxu0 0
    %719 = vmatpush1.bf16.msra.mxu0 %v653
    %720 = vmatprep.subr.bf16.mxu0 0
    %721 = vmatpush1.bf16.msra.mxu0 %v654
    %722 = vmatprep.subr.bf16.mxu0 0
    %723 = vmatpush1.bf16.msra.mxu0 %v655
    %724 = vmatprep.subr.bf16.mxu0 0
    %725 = vmatpush1.bf16.msra.mxu0 %v656
    %726 = vmatprep.subr.bf16.mxu0 0
    %727 = vmatpush1.bf16.msra.mxu0 %v657
    %728 = vmatprep.subr.bf16.mxu0 0
    %729 = vmatpush1.bf16.msra.mxu0 %v658
    %730 = vmatprep.subr.bf16.mxu0 0
    %731 = vmatpush1.bf16.msra.mxu0 %v659
    %732 = vmatprep.subr.bf16.mxu0 0
    %733 = vmatpush1.bf16.msra.mxu0 %v660
    %734 = vmatprep.subr.bf16.mxu0 0
    %735 = vmatpush1.bf16.msra.mxu0 %v661
    %736 = vmatprep.subr.bf16.mxu0 0
    %737 = vmatpush1.bf16.msra.mxu0 %v662
    %738 = vmatprep.subr.bf16.mxu0 0
    %739 = vmatpush1.bf16.msra.mxu0 %v663
    %740 = vmatprep.subr.bf16.mxu0 0
    %741 = vmatpush1.bf16.msra.mxu0 %v664
    %742 = vmatprep.subr.bf16.mxu0 0
    %743 = vmatpush1.bf16.msra.mxu0 %v665
    %744 = vmatprep.subr.bf16.mxu0 0
    %745 = vmatpush1.bf16.msra.mxu0 %v666
    %746 = vmatprep.subr.bf16.mxu0 0
    %747 = vmatpush1.bf16.msra.mxu0 %v667
    %748 = vmatprep.mubr.bf16.mxu0 %v517
    %749 = vmatmul.mubr.bf16.gmra.mrb[0].mxu0 %v516
    %v750 = vpop.f32.mrb[0].mxu0
    %v751 = vadd.f32 %v505, %v750
    %v752 = vpop.f32.mrb[0].mxu0
    %v753 = vpop.f32.mrb[0].mxu0
    %v754 = vpop.f32.mrb[0].mxu0
    %755 = vdwg.mxu0
    %756 = vmatprep.subr.bf16.mxu0 0
    %757 = vmatpush1.bf16.msra.mxu0 %v668
    %758 = vmatprep.subr.bf16.mxu0 0
    %759 = vmatpush1.bf16.msra.mxu0 %v669
    %760 = vmatprep.subr.bf16.mxu0 0
    %761 = vmatpush1.bf16.msra.mxu0 %v670
    %762 = vmatprep.subr.bf16.mxu0 0
    %763 = vmatpush1.bf16.msra.mxu0 %v671
    %764 = vmatprep.subr.bf16.mxu0 0
    %765 = vmatpush1.bf16.msra.mxu0 %v672
    %766 = vmatprep.subr.bf16.mxu0 0
    %767 = vmatpush1.bf16.msra.mxu0 %v673
    %768 = vmatprep.subr.bf16.mxu0 0
    %769 = vmatpush1.bf16.msra.mxu0 %v674
    %770 = vmatprep.subr.bf16.mxu0 0
    %771 = vmatpush1.bf16.msra.mxu0 %v675
    %772 = vmatprep.subr.bf16.mxu0 0
    %773 = vmatpush1.bf16.msra.mxu0 %v676
    %774 = vmatprep.subr.bf16.mxu0 0
    %775 = vmatpush1.bf16.msra.mxu0 %v677
    %776 = vmatprep.subr.bf16.mxu0 0
    %777 = vmatpush1.bf16.msra.mxu0 %v678
    %778 = vmatprep.subr.bf16.mxu0 0
    %779 = vmatpush1.bf16.msra.mxu0 %v679
    %780 = vmatprep.subr.bf16.mxu0 0
    %781 = vmatpush1.bf16.msra.mxu0 %v680
    %782 = vmatprep.subr.bf16.mxu0 0
    %783 = vmatpush1.bf16.msra.mxu0 %v681
    %784 = vmatprep.subr.bf16.mxu0 0
    %785 = vmatpush1.bf16.msra.mxu0 %v682
    %786 = vmatprep.subr.bf16.mxu0 0
    %787 = vmatpush1.bf16.msra.mxu0 %v683
    %788 = vmatprep.mubr.bf16.mxu0 %v519
    %789 = vmatmul.mubr.bf16.gmra.mrb[0].mxu0 %v518
    %v790 = vpop.f32.mrb[0].mxu0
    %v791 = vadd.f32 %v751, %v790
    %v792 = vpop.f32.mrb[0].mxu0
    %v793 = vpop.f32.mrb[0].mxu0
    %v794 = vpop.f32.mrb[0].mxu0
    %795 = vdwg.mxu0
    %v796 = vld [vmem:[%s4] sm:$0x1]
    %v798 = vlaneseq
    %v799 = vshrl.u32 %v798, 7
    %v800 = vsub.s32 0, %v799
    %v801 = vrot.slane %v796, %v800
    %v803 = vadd.f32 %v791, %v801
    %v804 = vmax.f32 %v803, 0.0
    %v805 = vpack.c.bf16 %v804, %v804
    %v806 = vld [vmem:[#allocation10] sm:$0xf]
    %v807 = vld [vmem:[#allocation10 + $0x4] sm:$0xf]
    %v808 = vld [vmem:[#allocation10 + $0x8] sm:$0xf]
    %v809 = vld [vmem:[#allocation10 + $0xc] sm:$0xf]
    %v810 = vld [vmem:[#allocation10 + $0x10] sm:$0xf]
    %v811 = vld [vmem:[#allocation10 + $0x14] sm:$0xf]
    %v812 = vld [vmem:[#allocation10 + $0x18] sm:$0xf]
    %v813 = vld [vmem:[#allocation10 + $0x1c] sm:$0xf]
    %v814 = vld [vmem:[#allocation10 + $0x20] sm:$0xf]
    %v815 = vld [vmem:[#allocation10 + $0x24] sm:$0xf]
    %v816 = vld [vmem:[#allocation10 + $0x28] sm:$0xf]
    %v817 = vld [vmem:[#allocation10 + $0x2c] sm:$0xf]
    %v818 = vld [vmem:[#allocation10 + $0x30] sm:$0xf]
    %v819 = vld [vmem:[#allocation10 + $0x34] sm:$0xf]
    %v820 = vld [vmem:[#allocation10 + $0x38] sm:$0xf]
    %v821 = vld [vmem:[#allocation10 + $0x3c] sm:$0xf]
    %v822 = vld [vmem:[%s6] sm:$0x1]
    %v824 = vlaneseq
    %v825 = vshrl.u32 %v824, 7
    %v826 = vsub.s32 0, %v825
    %v827 = vrot.slane %v822, %v826
    %v845 = vunpack.c.l.b16 %v806
    %v846 = vunpack.c.l.b16 %v807
    %v847 = vunpack.c.l.b16 %v808
    %v848 = vunpack.c.l.b16 %v809
    %v849 = vunpack.c.l.b16 %v810
    %v850 = vunpack.c.l.b16 %v811
    %v851 = vunpack.c.l.b16 %v812
    %v852 = vunpack.c.l.b16 %v813
    %v853 = vunpack.c.l.b16 %v814
    %v854 = vunpack.c.l.b16 %v815
    %v855 = vunpack.c.l.b16 %v816
    %v856 = vunpack.c.l.b16 %v817
    %v857 = vunpack.c.l.b16 %v818
    %v858 = vunpack.c.l.b16 %v819
    %v859 = vunpack.c.l.b16 %v820
    %v860 = vunpack.c.l.b16 %v821
    %v861 = vpack.c.b16 %v846, %v845
    %v862 = vpack.c.b16 %v848, %v847
    %v863 = vpack.c.b16 %v850, %v849
    %v864 = vpack.c.b16 %v852, %v851
    %v865 = vpack.c.b16 %v854, %v853
    %v866 = vpack.c.b16 %v856, %v855
    %v867 = vpack.c.b16 %v858, %v857
    %v868 = vpack.c.b16 %v860, %v859
    %877 = vmatprep.subr.bf16.mxu0 0
    %878 = vmatpush1.bf16.msra.mxu0 %v861
    %879 = vmatprep.subr.bf16.mxu0 0
    %880 = vmatpush1.bf16.msra.mxu0 %v862
    %881 = vmatprep.subr.bf16.mxu0 0
    %882 = vmatpush1.bf16.msra.mxu0 %v863
    %883 = vmatprep.subr.bf16.mxu0 0
    %884 = vmatpush1.bf16.msra.mxu0 %v864
    %885 = vmatprep.subr.bf16.mxu0 0
    %886 = vmatpush1.bf16.msra.mxu0 %v865
    %887 = vmatprep.subr.bf16.mxu0 0
    %888 = vmatpush1.bf16.msra.mxu0 %v866
    %889 = vmatprep.subr.bf16.mxu0 0
    %890 = vmatpush1.bf16.msra.mxu0 %v867
    %891 = vmatprep.subr.bf16.mxu0 0
    %892 = vmatpush1.bf16.msra.mxu0 %v868
    %893 = vmatprep.subr.bf16.mxu0 0
    %894 = vmatpush1.bf16.msra.mxu0 0
    %895 = vmatprep.subr.bf16.mxu0 0
    %896 = vmatpush1.bf16.msra.mxu0 0
    %897 = vmatprep.subr.bf16.mxu0 0
    %898 = vmatpush1.bf16.msra.mxu0 0
    %899 = vmatprep.subr.bf16.mxu0 0
    %900 = vmatpush1.bf16.msra.mxu0 0
    %901 = vmatprep.subr.bf16.mxu0 0
    %902 = vmatpush1.bf16.msra.mxu0 0
    %903 = vmatprep.subr.bf16.mxu0 0
    %904 = vmatpush1.bf16.msra.mxu0 0
    %905 = vmatprep.subr.bf16.mxu0 0
    %906 = vmatpush1.bf16.msra.mxu0 0
    %907 = vmatprep.subr.bf16.mxu0 0
    %908 = vmatpush1.bf16.msra.mxu0 0
    %909 = vmatprep.mubr.bf16.mxu0 0
    %910 = vmatmul.mubr.bf16.gmra.mrb[0].mxu0 %v805
    %v911 = vpop.f32.mrb[0].mxu0
    %v912 = vadd.f32 %v827, %v911
    %v913 = vpop.f32.mrb[0].mxu0
    %v914 = vpop.f32.mrb[0].mxu0
    %v915 = vpop.f32.mrb[0].mxu0
    %916 = vdwg.mxu0
    %917 = vst [vmem:[#allocation11] sm:$0xff] %v912
    // Predicated region
    $region50: #{tpu_custom_call.1} parent=1 // pred_check
      _
    $region51: #{tpu_custom_call.1} parent=1 // pred_check_branch
      %919 = sbr.rel (0) target = $region53
    $region52: #{tpu_custom_call.1} parent=1 // pred_region
      %s921 = ssub.s32 128, 128
      %922 = vsyncadd [#allocation4], %s921
      %s924 = sshll.u32 [#allocation11], 4
      %s925 = int_to_ptr.vmem [resolvable:$true] %s924
      %927 = dma.vmem_to_hbm [thread:$0]  %s925, 128, %s7, [#allocation4]
    $region53: #{tpu_custom_call.1} parent=1 // pred_fallthru
      _
    // Predicated region
    $region54: #{tpu_custom_call.1} parent=1 // pred_check
      _
    $region55: #{tpu_custom_call.1} parent=1 // pred_check_branch
      %929 = sbr.rel (0) target = $region57
    $region56: #{tpu_custom_call.1} parent=1 // pred_region
      %930 = dma.done [#allocation4], 128
    $region57: #{tpu_custom_call.1} parent=1 // pred_fallthru
      _
    %931 = vsyncpa [#allocation3], 1
    %932 = vsyncpa [#allocation6], 1
    %933 = vsyncpa [#allocation9], 1
    %934 = vsyncpa [#allocation4], 1

</llo_original>
